<compile_context>
chip_gen: v7x
topology: tpu7x:2x2x1
jax: 0.10.0
libtpu: 0.0.40
codegen_flags: <defaults>
</compile_context>

<pallas_src>
import functools

import jax
import jax.numpy as jnp
from jax.experimental import pallas as pl
from jax.experimental.pallas import tpu as pltpu


# ----------------------------- kernel body ---------------------------------


def attention_gate_kernel(x_ref, g_ref, wg_ref, wx_ref, bgx_ref, wpsi_ref,
                          bpsi_ref, o_ref, *, matmul_dtype):
    # x_ref: (Cin, TP), g_ref: (Cg, TP) — channels on sublanes, pixels on lanes.
    x = x_ref[...]
    g = g_ref[...]

    # conv_g + conv_x fused: two MXU matmuls accumulated in f32; weights already
    # in matmul_dtype, conv_g/conv_x biases pre-added on the host.
    s = (jnp.dot(wg_ref[...], g.astype(matmul_dtype),
                 preferred_element_type=jnp.float32)
         + jnp.dot(wx_ref[...], x.astype(matmul_dtype),
                   preferred_element_type=jnp.float32)
         + bgx_ref[...])                                   # (Cin, TP) f32

    # LeakyReLU(negative_slope=0.2): max(s, 0.2*s) (valid for slope < 1).
    p = jnp.maximum(s, 0.2 * s)

    # conv_psi (Cin -> 1) as a VPU multiply + sublane (XLU) reduce. The 1/6 of
    # Hardsigmoid is folded into wpsi, (bpsi/6 + 0.5) into the SMEM scalar, so
    # the whole Hardsigmoid collapses to a single clip.
    psi = jnp.sum(p * wpsi_ref[...], axis=0, keepdims=True) + bpsi_ref[0]  # (1, TP)
    psi = jnp.clip(psi, 0.0, 1.0)

    # Gate x (broadcast (1, TP) over channels) in the activation dtype so the
    # bf16 path never materializes an f32 copy of x. Lane-dense store.
    o_ref[...] = (x * psi.astype(x.dtype)).astype(o_ref.dtype)


# --------------------------- tiling / sizing --------------------------------


def _round_up(v, m):
    return ((v + m - 1) // m) * m


def _vmem_capacity_bytes():
    """Per-core VMEM capacity (64 MiB on v7x, 128 MiB on v5e/v6e)."""
    try:
        info = pltpu.get_tpu_info()
        cap = getattr(info, "vmem_capacity_bytes", None)
        if cap:
            return int(cap)
    except Exception:
        pass
    return 128 * 1024 * 1024


def _pick_tile_p(hw_pad, cin, cg, act_dtype, vmem_budget_bytes,
                 max_tile=32 * 1024):
    """Largest pixel tile (multiple of 128 dividing hw_pad, capped at max_tile)
    whose honest working set fits the budget.

    Honest = sublane-padded channel counts for the double-buffered x/g/out
    activation tiles plus the ~3 full-height f32 temporaries (s, p, product)
    and the psi rows that the kernel body materializes."""
    itemsize = jnp.dtype(act_dtype).itemsize
    sub = max(8, 32 // max(itemsize, 1))        # 8 for f32, 16 for bf16
    cin_p = _round_up(cin, sub)
    cg_p = _round_up(cg, sub)
    cin_f32 = _round_up(cin, 8)
    per_pixel = (2 * (2 * cin_p + cg_p) * itemsize     # 2 bufs x (x + out + g)
                 + (3 * cin_f32 + 8) * 4)              # f32 temps + psi rows
    target = max(128, vmem_budget_bytes // per_pixel)
    target = min(target, max_tile, hw_pad)
    t = max(128, (target // 128) * 128)
    while t > 128 and hw_pad % t != 0:
        t -= 128
    return t


def _adjust_tile_for_grid(hw_pad, tile_p, n_batch):
    """Shrink the pixel tile (staying a multiple of 128 that divides hw_pad)
    until the total grid has >= 4 steps and an even step count, when possible.
    Even totals let the v7x dual-TC 'parallel' split stay balanced; >= 4 steps
    lets the double-buffer pipeline hide the first DMA and last writeback."""
    def total(t):
        return n_batch * (hw_pad // t)

    candidates = [t for t in range(tile_p, 127, -128) if hw_pad % t == 0]
    for t in candidates:
        if total(t) >= 4 and total(t) % 2 == 0:
            return t
    for t in candidates:
        if total(t) % 2 == 0:
            return t
    return candidates[-1] if candidates else tile_p


# ------------------------------ wrapper -------------------------------------


def attention_gate(x_nchw, g_nchw, params, *, tile_p=None, matmul_dtype=None,
                   input_buffer_count=None):
    """x: (N, Cin, H, W), g: (N, Cg, H, W) -> (N, Cin, H, W).

    Operates on the native NCHW layout reshaped to (N, C, H*W): pixels stay
    contiguous on the lane axis, so stores are lane-dense even for tiny channel
    counts and no NCHW<->NHWC transposes are needed."""
    wg, bg, wx, bx, wpsi, bpsi = params
    N, Cin, H, W = x_nchw.shape
    Cg = g_nchw.shape[1]
    HW = H * W

    if matmul_dtype is None:
        # bf16 is MXU-native on every generation; accumulation stays f32 and the
        # result only feeds a [0,1] gate, so the accuracy impact is negligible.
        matmul_dtype = jnp.bfloat16

    act_dtype = x_nchw.dtype
    itemsize = jnp.dtype(act_dtype).itemsize

    # Free reshape to (N, C, HW); pad the pixel axis to the tiling granularity
    # so every tile is lane-dense (no masked vst) and no giant fallback tile is
    # ever needed. Padding granularity grows with the image so large images can
    # still use big (>=512 lane) tiles.
    gran = 128 if HW < 8192 else 1024
    HW_pad = _round_up(HW, gran)
    x3 = x_nchw.reshape(N, Cin, HW)
    g3 = g_nchw.reshape(N, Cg, HW)
    if HW_pad != HW:
        pad = ((0, 0), (0, 0), (0, HW_pad - HW))
        x3 = jnp.pad(x3, pad)
        g3 = jnp.pad(g3, pad)

    # Per-generation VMEM budget (~1/3 of capacity for the activation tiles).
    vmem_cap = _vmem_capacity_bytes()
    if tile_p is None:
        tile_p = _pick_tile_p(HW_pad, Cin, Cg, act_dtype, vmem_cap // 3)
        tile_p = _adjust_tile_for_grid(HW_pad, tile_p, N)
    assert HW_pad % tile_p == 0, "pixel tile must divide the padded H*W"
    grid = (N, HW_pad // tile_p)

    # One-off host-side packing: (out, in) weight matrices pre-cast to the
    # matmul dtype, conv_g/conv_x biases pre-added, Hardsigmoid constants folded
    # into the psi weight/bias (psi = clip(sum(p*w/6) + (b/6 + 1/2), 0, 1)).
    wg_m = wg.reshape(Cin, Cg).astype(matmul_dtype)
    wx_m = wx.reshape(Cin, Cin).astype(matmul_dtype)
    bgx = (bg + bx).reshape(Cin, 1).astype(jnp.float32)
    wpsi_c = (wpsi.reshape(Cin, 1) * (1.0 / 6.0)).astype(jnp.float32)
    bpsi_s = (bpsi.reshape(1) * (1.0 / 6.0) + 0.5).astype(jnp.float32)

    # Honest VMEM sizing (sublane padding + f32 temporaries + resident weights),
    # clamped under 3/4 of the physical per-core capacity.
    sub = max(8, 32 // max(itemsize, 1))
    cin_p, cg_p, cin8 = _round_up(Cin, sub), _round_up(Cg, sub), _round_up(Cin, 8)
    m_item = jnp.dtype(matmul_dtype).itemsize
    cin_pm = _round_up(Cin, max(8, 32 // max(m_item, 1)))
    act_bytes = 2 * tile_p * (2 * cin_p + cg_p) * itemsize
    tmp_bytes = tile_p * (3 * cin8 + 8) * 4
    wgt_bytes = 2 * (2 * cin_pm * _round_up(max(Cg, Cin), 128) * m_item
                     + 2 * cin8 * 128 * 4)
    footprint = act_bytes + tmp_bytes + wgt_bytes
    vmem_limit = int(min(max(footprint * 5 // 4 + (4 << 20), 16 << 20),
                         vmem_cap * 3 // 4))

    kernel = functools.partial(attention_gate_kernel, matmul_dtype=matmul_dtype)

    # Optional deeper buffering of the two streamed inputs (only if profiling
    # shows exposed strided-channel DMA once tiles are small).
    if input_buffer_count is not None and input_buffer_count > 2:
        xg_kwargs = {"pipeline_mode": pl.Buffered(input_buffer_count)}
    else:
        xg_kwargs = {}

    out3 = pl.pallas_call(
        kernel,
        out_shape=jax.ShapeDtypeStruct((N, Cin, HW_pad), act_dtype),
        grid_spec=pltpu.PrefetchScalarGridSpec(
            num_scalar_prefetch=0,
            grid=grid,
            in_specs=[
                pl.BlockSpec((None, Cin, tile_p), lambda n, j: (n, 0, j),
                             **xg_kwargs),                                   # x tile
                pl.BlockSpec((None, Cg, tile_p), lambda n, j: (n, 0, j),
                             **xg_kwargs),                                   # g tile
                pl.BlockSpec((Cin, Cg), lambda n, j: (0, 0)),                # Wg
                pl.BlockSpec((Cin, Cin), lambda n, j: (0, 0)),               # Wx
                pl.BlockSpec((Cin, 1), lambda n, j: (0, 0)),                 # bg + bx
                pl.BlockSpec((Cin, 1), lambda n, j: (0, 0)),                 # Wpsi/6
                pl.BlockSpec(memory_space=pltpu.MemorySpace.SMEM),           # bpsi/6+0.5
            ],
            out_specs=pl.BlockSpec((None, Cin, tile_p), lambda n, j: (n, 0, j)),
        ),
        compiler_params=pltpu.CompilerParams(
            dimension_semantics=("parallel", "parallel"),
            vmem_limit_bytes=vmem_limit),
    )(x3, g3, wg_m, wx_m, bgx, wpsi_c, bpsi_s)

    if HW_pad != HW:
        out3 = out3[:, :, :HW]
    return out3.reshape(N, Cin, H, W)


# --------------------------- params & reference -----------------------------


def init_params(key, in_channels, gating_channels, dtype=jnp.float32):
    """Synthetic params in PyTorch-like (out, in) layout (1x1 kernels squeezed)."""
    k = jax.random.split(key, 6)
    wg = jax.random.normal(k[0], (in_channels, gating_channels), dtype) * 0.1
    bg = jax.random.normal(k[1], (in_channels,), dtype) * 0.1
    wx = jax.random.normal(k[2], (in_channels, in_channels), dtype) * 0.1
    bx = jax.random.normal(k[3], (in_channels,), dtype) * 0.1
    wpsi = jax.random.normal(k[4], (1, in_channels), dtype) * 0.1
    bpsi = jax.random.normal(k[5], (1,), dtype) * 0.1
    return wg, bg, wx, bx, wpsi, bpsi


def attention_gate_ref(x, g, params):
    """Pure-JAX NCHW reference mirroring the PyTorch forward."""
    wg, bg, wx, bx, wpsi, bpsi = params
    g1 = jnp.einsum('oc,nchw->nohw', wg, g) + bg[None, :, None, None]
    x1 = jnp.einsum('oc,nchw->nohw', wx, x) + bx[None, :, None, None]
    s = g1 + x1
    p = jnp.where(s >= 0, s, 0.2 * s)                 # LeakyReLU(0.2)
    psi = jnp.einsum('oc,nchw->nohw', wpsi, p) + bpsi[None, :, None, None]
    psi = jnp.clip(psi / 6.0 + 0.5, 0.0, 1.0)         # Hardsigmoid
    return x * psi


# ----------------------------------- test -----------------------------------


if __name__ == "__main__":
    key = jax.random.PRNGKey(0)
    kx, kg, kp = jax.random.split(key, 3)

    N, Cin, Cg, H, W = 2, 4, 8, 16, 16
    x = jax.random.normal(kx, (N, Cin, H, W), jnp.float32)
    g = jax.random.normal(kg, (N, Cg, H, W), jnp.float32)
    params = init_params(kp, Cin, Cg)
    ref = attention_gate_ref(x, g, params)

    # Strict f32 MXU path — must match the reference tightly.
    out_f32 = jax.block_until_ready(
        attention_gate(x, g, params, matmul_dtype=jnp.float32))
    assert out_f32.shape == (N, Cin, H, W)
    assert jnp.allclose(out_f32, ref, atol=1e-5, rtol=1e-5)

    # Default path: bf16 MXU matmuls (f32 accumulation, f32 elementwise).
    out_def = jax.block_until_ready(attention_gate(x, g, params))
    assert out_def.shape == (N, Cin, H, W)
    assert jnp.allclose(out_def, ref, atol=5e-2, rtol=5e-2)

    # bf16 activations on the wire (halves HBM traffic) — loose tolerance.
    out_bf16 = jax.block_until_ready(
        attention_gate(x.astype(jnp.bfloat16), g.astype(jnp.bfloat16), params))
    assert out_bf16.shape == (N, Cin, H, W)
    assert jnp.allclose(out_bf16.astype(jnp.float32), ref, atol=1e-1, rtol=1e-1)

    # Ragged spatial size (H*W not a multiple of 128) exercises the host-side
    # pad path that replaced the old single-giant-tile fallback.
    H2, W2 = 15, 15
    x2 = jax.random.normal(kx, (1, Cin, H2, W2), jnp.float32)
    g2 = jax.random.normal(kg, (1, Cg, H2, W2), jnp.float32)
    out2 = jax.block_until_ready(
        attention_gate(x2, g2, params, matmul_dtype=jnp.float32))
    ref2 = attention_gate_ref(x2, g2, params)
    assert out2.shape == (1, Cin, H2, W2)
    assert jnp.allclose(out2, ref2, atol=1e-5, rtol=1e-5)

    print("KERNEL_OK")
</pallas_src>

<mosaic_0001>
module attributes {stable_mosaic.version = 11 : i64} {
  func.func @attention_gate_kernel(%arg0: i32, %arg1: i32, %arg2: memref<1x4x128xf32, #tpu.memory_space<vmem>>, %arg3: memref<1x8x128xf32, #tpu.memory_space<vmem>>, %arg4: memref<4x8xf32, #tpu.memory_space<vmem>>, %arg5: memref<4x4xf32, #tpu.memory_space<vmem>>, %arg6: memref<4x1xf32, #tpu.memory_space<vmem>>, %arg7: memref<4x1xf32, #tpu.memory_space<vmem>>, %arg8: memref<1xf32, #tpu.memory_space<smem>>, %arg9: memref<1x4x128xf32, #tpu.memory_space<vmem>>) attributes {dimension_semantics = [#tpu.dimension_semantics<parallel>, #tpu.dimension_semantics<parallel>], iteration_bounds = array<i64: 2, 2>, scalar_prefetch = 0 : i64, scratch_operands = 0 : i64, tpu.core_type = #tpu.core_type<tc>, window_params = [{transform_indices = @transform_0, window_bounds = array<i64: 1, 4, 128>}, {transform_indices = @transform_1, window_bounds = array<i64: 1, 8, 128>}, {pipeline_mode = #tpu.pipeline_mode<synchronous>, transform_indices = @transform_2, window_bounds = array<i64: 4, 8>}, {pipeline_mode = #tpu.pipeline_mode<synchronous>, transform_indices = @transform_3, window_bounds = array<i64: 4, 4>}, {pipeline_mode = #tpu.pipeline_mode<synchronous>, transform_indices = @transform_4, window_bounds = array<i64: 4, 1>}, {pipeline_mode = #tpu.pipeline_mode<synchronous>, transform_indices = @transform_5, window_bounds = array<i64: 4, 1>}, {transform_indices = @transform_6, window_bounds = array<i64: 1>}, {transform_indices = @transform_7, window_bounds = array<i64: 1, 4, 128>}]} {
    %c0 = arith.constant 0 : index
    %c0_0 = arith.constant 0 : index
    %c0_1 = arith.constant 0 : index
    %0 = vector.load %arg2[%c0, %c0_0, %c0_1] : memref<1x4x128xf32, #tpu.memory_space<vmem>>, vector<1x4x128xf32>
    %1 = vector.shape_cast %0 : vector<1x4x128xf32> to vector<4x128xf32>
    %c0_2 = arith.constant 0 : index
    %c0_3 = arith.constant 0 : index
    %c0_4 = arith.constant 0 : index
    %2 = vector.load %arg3[%c0_2, %c0_3, %c0_4] : memref<1x8x128xf32, #tpu.memory_space<vmem>>, vector<1x8x128xf32>
    %3 = vector.shape_cast %2 : vector<1x8x128xf32> to vector<8x128xf32>
    %c0_5 = arith.constant 0 : index
    %c0_6 = arith.constant 0 : index
    %4 = vector.load %arg4[%c0_5, %c0_6] : memref<4x8xf32, #tpu.memory_space<vmem>>, vector<4x8xf32>
    %cst = arith.constant dense<0.000000e+00> : vector<4x128xf32>
    %5 = tpu.matmul %4, %3, %cst {dimension_numbers = #tpu.dot_dimension_numbers<[1], [0], [0], [1], [0, 0, 1, 1], [], []>} : vector<4x8xf32>, vector<8x128xf32>, vector<4x128xf32> -> vector<4x128xf32>
    %c0_7 = arith.constant 0 : index
    %c0_8 = arith.constant 0 : index
    %6 = vector.load %arg5[%c0_7, %c0_8] : memref<4x4xf32, #tpu.memory_space<vmem>>, vector<4x4xf32>
    %cst_9 = arith.constant dense<0.000000e+00> : vector<4x128xf32>
    %7 = tpu.matmul %6, %1, %cst_9 {dimension_numbers = #tpu.dot_dimension_numbers<[1], [0], [0], [1], [0, 0, 1, 1], [], []>} : vector<4x4xf32>, vector<4x128xf32>, vector<4x128xf32> -> vector<4x128xf32>
    %8 = arith.addf %5, %7 : vector<4x128xf32>
    %c0_10 = arith.constant 0 : index
    %c0_11 = arith.constant 0 : index
    %9 = vector.load %arg6[%c0_10, %c0_11] : memref<4x1xf32, #tpu.memory_space<vmem>>, vector<4x1xf32>
    %10 = vector.broadcast %9 : vector<4x1xf32> to vector<4x128xf32>
    %11 = arith.addf %8, %10 : vector<4x128xf32>
    %cst_12 = arith.constant 2.000000e-01 : f32
    %12 = vector.broadcast %cst_12 : f32 to vector<4x128xf32>
    %13 = arith.mulf %12, %11 : vector<4x128xf32>
    %14 = arith.maximumf %11, %13 : vector<4x128xf32>
    %c0_13 = arith.constant 0 : index
    %c0_14 = arith.constant 0 : index
    %15 = vector.load %arg7[%c0_13, %c0_14] : memref<4x1xf32, #tpu.memory_space<vmem>>, vector<4x1xf32>
    %16 = vector.broadcast %15 : vector<4x1xf32> to vector<4x128xf32>
    %17 = arith.mulf %14, %16 : vector<4x128xf32>
    %cst_15 = arith.constant dense<0.000000e+00> : vector<128xf32>
    %18 = vector.multi_reduction <add>, %17, %cst_15 [0] : vector<4x128xf32> to vector<128xf32>
    %19 = vector.shape_cast %18 : vector<128xf32> to vector<1x128xf32>
    %c0_16 = arith.constant 0 : index
    %20 = memref.load %arg8[%c0_16] : memref<1xf32, #tpu.memory_space<smem>>
    %21 = vector.broadcast %20 : f32 to vector<1x128xf32>
    %22 = arith.addf %19, %21 : vector<1x128xf32>
    %cst_17 = arith.constant 0.000000e+00 : f32
    %cst_18 = arith.constant 1.000000e+00 : f32
    %23 = vector.broadcast %cst_17 : f32 to vector<1x128xf32>
    %24 = arith.maximumf %23, %22 : vector<1x128xf32>
    %25 = vector.broadcast %cst_18 : f32 to vector<1x128xf32>
    %26 = arith.minimumf %25, %24 : vector<1x128xf32>
    %27 = vector.broadcast %26 : vector<1x128xf32> to vector<4x128xf32>
    %28 = arith.mulf %1, %27 : vector<4x128xf32>
    %c0_19 = arith.constant 0 : index
    %c0_20 = arith.constant 0 : index
    %c0_21 = arith.constant 0 : index
    %29 = vector.load %arg9[%c0_19, %c0_20, %c0_21] : memref<1x4x128xf32, #tpu.memory_space<vmem>>, vector<1x4x128xf32>
    %30 = vector.shape_cast %29 : vector<1x4x128xf32> to vector<4x128xf32>
    %31 = vector.shape_cast %28 : vector<4x128xf32> to vector<1x4x128xf32>
    tpu.vector_store %arg9[%c0_19, %c0_20, %c0_21], %31 {strides = array<i32>} : memref<1x4x128xf32, #tpu.memory_space<vmem>>, vector<1x4x128xf32>,
    return
  }
  func.func @transform_0(%arg0: i32, %arg1: i32) -> (i32, i32, i32) {
    %c0_i32 = arith.constant 0 : i32
    %c0_i32_0 = arith.constant 0 : i32
    return %arg0, %c0_i32, %arg1 : i32, i32, i32
  }
  func.func @transform_1(%arg0: i32, %arg1: i32) -> (i32, i32, i32) {
    %c0_i32 = arith.constant 0 : i32
    %c0_i32_0 = arith.constant 0 : i32
    return %arg0, %c0_i32, %arg1 : i32, i32, i32
  }
  func.func @transform_2(%arg0: i32, %arg1: i32) -> (i32, i32) {
    %c0_i32 = arith.constant 0 : i32
    %c0_i32_0 = arith.constant 0 : i32
    %c0_i32_1 = arith.constant 0 : i32
    return %c0_i32, %c0_i32_0 : i32, i32
  }
  func.func @transform_3(%arg0: i32, %arg1: i32) -> (i32, i32) {
    %c0_i32 = arith.constant 0 : i32
    %c0_i32_0 = arith.constant 0 : i32
    %c0_i32_1 = arith.constant 0 : i32
    return %c0_i32, %c0_i32_0 : i32, i32
  }
  func.func @transform_4(%arg0: i32, %arg1: i32) -> (i32, i32) {
    %c0_i32 = arith.constant 0 : i32
    %c0_i32_0 = arith.constant 0 : i32
    %c0_i32_1 = arith.constant 0 : i32
    return %c0_i32, %c0_i32_0 : i32, i32
  }
  func.func @transform_5(%arg0: i32, %arg1: i32) -> (i32, i32) {
    %c0_i32 = arith.constant 0 : i32
    %c0_i32_0 = arith.constant 0 : i32
    %c0_i32_1 = arith.constant 0 : i32
    return %c0_i32, %c0_i32_0 : i32, i32
  }
  func.func @transform_6(%arg0: i32, %arg1: i32) -> i32 {
    %c0_i32 = arith.constant 0 : i32
    %c0_i32_0 = arith.constant 0 : i32
    return %c0_i32 : i32
  }
  func.func @transform_7(%arg0: i32, %arg1: i32) -> (i32, i32, i32) {
    %c0_i32 = arith.constant 0 : i32
    %c0_i32_0 = arith.constant 0 : i32
    return %arg0, %c0_i32, %arg1 : i32, i32, i32
  }
}

</mosaic_0001>

<llo_original>
// kernel: tpu_custom_call.1
$region0: #{tpu_custom_call.1}
  #allocation0 [shape = 'u32[]', space=smem, size = 0x4, offset = 0x4, fixed_abs, tag = 'smem constant byte address 0x4 - core index']
  #allocation1 [shape = 'u32[144,128]{1,0:T(1,128)}', space=vmem, size = 0x12000, scoped, tag = 'internal scratch']
  #allocation2 [shape = 'f32[1]{0:T(128)S(6)}', space=smem, size = 0x200, scoped, tag = 'scoped memory for tpu_custom_call.1']
  %s0 = inlined_call_operand.hbm [shape: f32[2,4,256], index: 0, kind: input, shape index: {}]
  %s1 = inlined_call_operand.hbm [shape: f32[2,8,256], index: 1, kind: input, shape index: {}]
  %s2 = inlined_call_operand.vmem [shape: f32[4,8], index: 2, kind: input, shape index: {}]
  %s3 = inlined_call_operand.vmem [shape: f32[4,4], index: 3, kind: input, shape index: {}]
  %s4 = inlined_call_operand.vmem [shape: f32[4,1], index: 4, kind: input, shape index: {}]
  %s5 = inlined_call_operand.vmem [shape: f32[4,1], index: 5, kind: input, shape index: {}]
  %s6 = inlined_call_operand.<no memory space> [shape: f32[1], index: 6, kind: input, shape index: {}]
  %s7 = inlined_call_operand.hbm [shape: f32[2,4,256], index: 7, kind: output, shape index: {}]
  %s8 = sld [smem:[#allocation0]]
  $region69: #{tpu_custom_call.1} parent=0
    _
  %s10 = ssub.s32 1, %s8
  %s11 = scalar_select 0, %s10, %s8
  %12 = sst [smem:[#allocation2]] %s6
  $region1: #{tpu_custom_call.1} parent=0
    #allocation3 [shape = 'u8[4096]{0}', space=vmem, size = 0x1000, scoped, tag = 'input window, operand 0']
    #allocation4 [shape = 's32[2]{0}', space=sflag, size = 0x8, scoped, tag = 'scoped memory for tpu_custom_call.1']
    #allocation5 [shape = 's32[2]{0}', space=sflag, size = 0x8, scoped, tag = 'scoped memory for tpu_custom_call.1']
    #allocation6 [shape = 'u8[8192]{0}', space=vmem, size = 0x2000, scoped, tag = 'input window, operand 1']
    #allocation7 [shape = 's32[2]{0}', space=sflag, size = 0x8, scoped, tag = 'scoped memory for tpu_custom_call.1']
    #allocation8 [shape = 'u8[4096]{0}', space=vmem, size = 0x1000, scoped, tag = 'output window, operand 0']
    %13 = vsyncpa [#allocation4], 0
    %s14 = scalar_lea.sflag [#allocation4], 1
    %15 = vsyncpa %s14, 0
    %16 = vsyncpa [#allocation7], 0
    %s17 = scalar_lea.sflag [#allocation7], 1
    %18 = vsyncpa %s17, 0
    %19 = vsyncpa [#allocation5], 0
    %s20 = scalar_lea.sflag [#allocation5], 1
    %21 = vsyncpa %s20, 0
    loop: start=0, step=1, limit=6
    $region2: #{tpu_custom_call.1} parent=1 // loop_pre_header
      _
    $region3: #{tpu_custom_call.1} parent=1 // loop_header
      %s23 = sphi 0, %s27
      %p24 = scmp.ge.s32.totalorder %s23, 6
      %s30 = sphi 0, %s42
      %s31 = sphi 0, %s38
      %s32 = sphi 0, %s30
      %s33 = sphi 0, %s31
      %s34 = sphi 0, %s32
      %s35 = sphi 0, %s33
      %s47 = sphi 0, %s49
      %s50 = sphi 0, %s47
      %s51 = sphi 0, %s50
      %s67 = sphi 0, %s51
      %s75 = sphi 0, %s77
      %s78 = sphi 0, %s75
      %s79 = sphi 0, %s78
      %s95 = sphi 0, %s79
      %s99 = sphi 0, %s99
      %s101 = sphi 0, %s99
      %s102 = sphi 0, %s101
      %s116 = sphi 0, %s102
      %s120 = sphi 0, %s120
      %s122 = sphi 0, %s120
      %s123 = sphi 0, %s122
      %s137 = sphi 0, %s123
      %s141 = sphi 0, %s141
      %s143 = sphi 0, %s141
      %s144 = sphi 0, %s143
      %s158 = sphi 0, %s144
      %s162 = sphi 0, %s162
      %s164 = sphi 0, %s162
      %s165 = sphi 0, %s164
      %s179 = sphi 0, %s165
      %s183 = sphi 0, %s183
      %s185 = sphi 0, %s183
      %s186 = sphi 0, %s185
      %s200 = sphi 0, %s186
      %s208 = sphi 0, %s210
      %s211 = sphi 0, %s208
      %s212 = sphi 0, %s211
      %s228 = sphi 0, %s212
    $region4: #{tpu_custom_call.1} parent=1 // loop_header_branch
      %26 = sbr.rel (%p24) target = $region8
    $region5: #{tpu_custom_call.1} parent=1 // loop_body
      %s28 = ssub.s32 %s23, 1
      %s29 = ssub.s32 %s23, 2
      %s36 = sadd.s32 1, %s31
      %p37 = scmp.ge.s32.totalorder %s36, 2
      %s38 = scalar_select %p37, 0, %s36
      %s39 = sadd.s32 1, %s30
      %s40 = scalar_select %p37, %s39, %s30
      %p41 = scmp.ge.s32.totalorder %s40, 2
      %s42 = scalar_select %p41, 0, %s40
      %s43 = ssub.s32 %s30, %s42
      %s44 = ssub.s32 %s31, %s38
      %s45 = sor.u32 %s43, %s44
      %p46 = scmp.eq.s32.totalorder %s45, 0
      %s48 = sadd.s32 %s47, 1
      %s49 = scalar_select %p46, %s47, %s48
      %p52 = pneg %p46
      %p53 = scmp.eq.s32.totalorder %s23, 3
      %p54 = por %p52, %p53
      %p55 = scmp.ne.s32.totalorder %s47, %s50
      %p56 = scmp.eq.s32.totalorder %s23, 0
      %p57 = por %p55, %p56
      %p58 = scmp.ne.s32.totalorder %s47, %s50
      %p59 = scmp.eq.s32.totalorder %s28, 3
      %p60 = por %p58, %p59
      %p61 = scmp.ne.s32.totalorder %s50, %s51
      %p62 = scmp.eq.s32.totalorder %s28, 0
      %p63 = por %p61, %p62
      %p64 = scmp.ne.s32.totalorder %s50, %s51
      %p65 = scmp.eq.s32.totalorder %s29, 3
      %p66 = por %p64, %p65
      %p68 = scmp.ne.s32.totalorder %s51, %s67
      %p69 = scmp.eq.s32.totalorder %s29, 0
      %p70 = por %p68, %p69
      %s71 = ssub.s32 %s30, %s42
      %s72 = ssub.s32 %s31, %s38
      %s73 = sor.u32 %s71, %s72
      %p74 = scmp.eq.s32.totalorder %s73, 0
      %s76 = sadd.s32 %s75, 1
      %s77 = scalar_select %p74, %s75, %s76
      %p80 = pneg %p74
      %p81 = scmp.eq.s32.totalorder %s23, 3
      %p82 = por %p80, %p81
      %p83 = scmp.ne.s32.totalorder %s75, %s78
      %p84 = scmp.eq.s32.totalorder %s23, 0
      %p85 = por %p83, %p84
      %p86 = scmp.ne.s32.totalorder %s75, %s78
      %p87 = scmp.eq.s32.totalorder %s28, 3
      %p88 = por %p86, %p87
      %p89 = scmp.ne.s32.totalorder %s78, %s79
      %p90 = scmp.eq.s32.totalorder %s28, 0
      %p91 = por %p89, %p90
      %p92 = scmp.ne.s32.totalorder %s78, %s79
      %p93 = scmp.eq.s32.totalorder %s29, 3
      %p94 = por %p92, %p93
      %p96 = scmp.ne.s32.totalorder %s79, %s95
      %p97 = scmp.eq.s32.totalorder %s29, 0
      %p98 = por %p96, %p97
      %s100 = sadd.s32 %s99, 1
      %p103 = scmp.eq.s32.totalorder %s23, 3
      %p104 = scmp.ne.s32.totalorder %s99, %s101
      %p105 = scmp.eq.s32.totalorder %s23, 0
      %p106 = por %p104, %p105
      %p107 = scmp.ne.s32.totalorder %s99, %s101
      %p108 = scmp.eq.s32.totalorder %s28, 3
      %p109 = por %p107, %p108
      %p110 = scmp.ne.s32.totalorder %s101, %s102
      %p111 = scmp.eq.s32.totalorder %s28, 0
      %p112 = por %p110, %p111
      %p113 = scmp.ne.s32.totalorder %s101, %s102
      %p114 = scmp.eq.s32.totalorder %s29, 3
      %p115 = por %p113, %p114
      %p117 = scmp.ne.s32.totalorder %s102, %s116
      %p118 = scmp.eq.s32.totalorder %s29, 0
      %p119 = por %p117, %p118
      %s121 = sadd.s32 %s120, 1
      %p124 = scmp.eq.s32.totalorder %s23, 3
      %p125 = scmp.ne.s32.totalorder %s120, %s122
      %p126 = scmp.eq.s32.totalorder %s23, 0
      %p127 = por %p125, %p126
      %p128 = scmp.ne.s32.totalorder %s120, %s122
      %p129 = scmp.eq.s32.totalorder %s28, 3
      %p130 = por %p128, %p129
      %p131 = scmp.ne.s32.totalorder %s122, %s123
      %p132 = scmp.eq.s32.totalorder %s28, 0
      %p133 = por %p131, %p132
      %p134 = scmp.ne.s32.totalorder %s122, %s123
      %p135 = scmp.eq.s32.totalorder %s29, 3
      %p136 = por %p134, %p135
      %p138 = scmp.ne.s32.totalorder %s123, %s137
      %p139 = scmp.eq.s32.totalorder %s29, 0
      %p140 = por %p138, %p139
      %s142 = sadd.s32 %s141, 1
      %p145 = scmp.eq.s32.totalorder %s23, 3
      %p146 = scmp.ne.s32.totalorder %s141, %s143
      %p147 = scmp.eq.s32.totalorder %s23, 0
      %p148 = por %p146, %p147
      %p149 = scmp.ne.s32.totalorder %s141, %s143
      %p150 = scmp.eq.s32.totalorder %s28, 3
      %p151 = por %p149, %p150
      %p152 = scmp.ne.s32.totalorder %s143, %s144
      %p153 = scmp.eq.s32.totalorder %s28, 0
      %p154 = por %p152, %p153
      %p155 = scmp.ne.s32.totalorder %s143, %s144
      %p156 = scmp.eq.s32.totalorder %s29, 3
      %p157 = por %p155, %p156
      %p159 = scmp.ne.s32.totalorder %s144, %s158
      %p160 = scmp.eq.s32.totalorder %s29, 0
      %p161 = por %p159, %p160
      %s163 = sadd.s32 %s162, 1
      %p166 = scmp.eq.s32.totalorder %s23, 3
      %p167 = scmp.ne.s32.totalorder %s162, %s164
      %p168 = scmp.eq.s32.totalorder %s23, 0
      %p169 = por %p167, %p168
      %p170 = scmp.ne.s32.totalorder %s162, %s164
      %p171 = scmp.eq.s32.totalorder %s28, 3
      %p172 = por %p170, %p171
      %p173 = scmp.ne.s32.totalorder %s164, %s165
      %p174 = scmp.eq.s32.totalorder %s28, 0
      %p175 = por %p173, %p174
      %p176 = scmp.ne.s32.totalorder %s164, %s165
      %p177 = scmp.eq.s32.totalorder %s29, 3
      %p178 = por %p176, %p177
      %p180 = scmp.ne.s32.totalorder %s165, %s179
      %p181 = scmp.eq.s32.totalorder %s29, 0
      %p182 = por %p180, %p181
      %s184 = sadd.s32 %s183, 1
      %p187 = scmp.eq.s32.totalorder %s23, 3
      %p188 = scmp.ne.s32.totalorder %s183, %s185
      %p189 = scmp.eq.s32.totalorder %s23, 0
      %p190 = por %p188, %p189
      %p191 = scmp.ne.s32.totalorder %s183, %s185
      %p192 = scmp.eq.s32.totalorder %s28, 3
      %p193 = por %p191, %p192
      %p194 = scmp.ne.s32.totalorder %s185, %s186
      %p195 = scmp.eq.s32.totalorder %s28, 0
      %p196 = por %p194, %p195
      %p197 = scmp.ne.s32.totalorder %s185, %s186
      %p198 = scmp.eq.s32.totalorder %s29, 3
      %p199 = por %p197, %p198
      %p201 = scmp.ne.s32.totalorder %s186, %s200
      %p202 = scmp.eq.s32.totalorder %s29, 0
      %p203 = por %p201, %p202
      %s204 = ssub.s32 %s30, %s42
      %s205 = ssub.s32 %s31, %s38
      %s206 = sor.u32 %s204, %s205
      %p207 = scmp.eq.s32.totalorder %s206, 0
      %s209 = sadd.s32 %s208, 1
      %s210 = scalar_select %p207, %s208, %s209
      %p213 = pneg %p207
      %p214 = scmp.eq.s32.totalorder %s23, 3
      %p215 = por %p213, %p214
      %p216 = scmp.ne.s32.totalorder %s208, %s211
      %p217 = scmp.eq.s32.totalorder %s23, 0
      %p218 = por %p216, %p217
      %p219 = scmp.ne.s32.totalorder %s208, %s211
      %p220 = scmp.eq.s32.totalorder %s28, 3
      %p221 = por %p219, %p220
      %p222 = scmp.ne.s32.totalorder %s211, %s212
      %p223 = scmp.eq.s32.totalorder %s28, 0
      %p224 = por %p222, %p223
      %p225 = scmp.ne.s32.totalorder %s211, %s212
      %p226 = scmp.eq.s32.totalorder %s29, 3
      %p227 = por %p225, %p226
      %p229 = scmp.ne.s32.totalorder %s212, %s228
      %p230 = scmp.eq.s32.totalorder %s29, 0
      %p231 = por %p229, %p230
      %p232 = scmp.le.s32.totalorder 1, %s23
      %p233 = scmp.lt.s32.totalorder %s23, 5
      %p234 = pnand %p232, %p233
      %p235 = pneg %p234
      // Predicated region
      $region9: #{tpu_custom_call.1} parent=5 // pred_check
        _
      $region10: #{tpu_custom_call.1} parent=5 // pred_check_branch
        %237 = sbr.rel (%p234) target = $region12
      $region11: #{tpu_custom_call.1} parent=5 // pred_region
        %s238 = ssub.s32 %s23, 1
        // Predicated region
        $region13: #{tpu_custom_call.1} parent=11 // pred_check
          %p239 = pneg %p112
        $region14: #{tpu_custom_call.1} parent=11 // pred_check_branch
          %241 = sbr.rel (%p239) target = $region16
        $region15: #{tpu_custom_call.1} parent=11 // pred_region
          _
        $region16: #{tpu_custom_call.1} parent=11 // pred_fallthru
          _
        // Predicated region
        $region17: #{tpu_custom_call.1} parent=11 // pred_check
          %p242 = pneg %p133
        $region18: #{tpu_custom_call.1} parent=11 // pred_check_branch
          %244 = sbr.rel (%p242) target = $region20
        $region19: #{tpu_custom_call.1} parent=11 // pred_region
          _
        $region20: #{tpu_custom_call.1} parent=11 // pred_fallthru
          _
        // Predicated region
        $region21: #{tpu_custom_call.1} parent=11 // pred_check
          %p245 = pneg %p154
        $region22: #{tpu_custom_call.1} parent=11 // pred_check_branch
          %247 = sbr.rel (%p245) target = $region24
        $region23: #{tpu_custom_call.1} parent=11 // pred_region
          _
        $region24: #{tpu_custom_call.1} parent=11 // pred_fallthru
          _
        // Predicated region
        $region25: #{tpu_custom_call.1} parent=11 // pred_check
          %p248 = pneg %p175
        $region26: #{tpu_custom_call.1} parent=11 // pred_check_branch
          %250 = sbr.rel (%p248) target = $region28
        $region27: #{tpu_custom_call.1} parent=11 // pred_region
          _
        $region28: #{tpu_custom_call.1} parent=11 // pred_fallthru
          _
        // Predicated region
        $region29: #{tpu_custom_call.1} parent=11 // pred_check
          %p251 = pneg %p196
        $region30: #{tpu_custom_call.1} parent=11 // pred_check_branch
          %253 = sbr.rel (%p251) target = $region32
        $region31: #{tpu_custom_call.1} parent=11 // pred_region
          _
        $region32: #{tpu_custom_call.1} parent=11 // pred_fallthru
          _
      $region12: #{tpu_custom_call.1} parent=5 // pred_fallthru
        _
      %p254 = scmp.lt.s32.totalorder %s23, 4
      // Predicated region
      $region33: #{tpu_custom_call.1} parent=5 // pred_check
        %p255 = pneg %p254
      $region34: #{tpu_custom_call.1} parent=5 // pred_check_branch
        %257 = sbr.rel (%p255) target = $region36
      $region35: #{tpu_custom_call.1} parent=5 // pred_region
        // Predicated region
        $region37: #{tpu_custom_call.1} parent=35 // pred_check
          %p258 = pneg %p57
        $region38: #{tpu_custom_call.1} parent=35 // pred_check_branch
          %260 = sbr.rel (%p258) target = $region40
        $region39: #{tpu_custom_call.1} parent=35 // pred_region
          %s261 = sand.u32 %s47, 1
          %s262 = scalar_lea.sflag [#allocation4], %s261
          %s263 = sand.u32 %s47, 1
          %s264 = smul.addr %s263, 4
          %s265 = scalar_lea.vmem [#allocation3], %s264
          %s267 = ssub.s32 64, 64
          %268 = vsyncadd %s262, %s267
          %s269 = smul.addr %s30, 2
          %s270 = sadd.s32 %s31, %s269
          %s271 = smul.addr %s270, 64
          %s272 = scalar_lea.hbm %s0, %s271
          %s274 = sshll.u32 %s265, 4
          %s275 = int_to_ptr.vmem [resolvable:$true] %s274
          %277 = dma.hbm_to_vmem [thread:$0]  %s272, 64, %s275, %s262
        $region40: #{tpu_custom_call.1} parent=35 // pred_fallthru
          _
        // Predicated region
        $region41: #{tpu_custom_call.1} parent=35 // pred_check
          %p278 = pneg %p85
        $region42: #{tpu_custom_call.1} parent=35 // pred_check_branch
          %280 = sbr.rel (%p278) target = $region44
        $region43: #{tpu_custom_call.1} parent=35 // pred_region
          %s281 = sand.u32 %s75, 1
          %s282 = scalar_lea.sflag [#allocation7], %s281
          %s283 = sand.u32 %s75, 1
          %s284 = smul.addr %s283, 8
          %s285 = scalar_lea.vmem [#allocation6], %s284
          %s287 = ssub.s32 128, 128
          %288 = vsyncadd %s282, %s287
          %s289 = smul.addr %s30, 2
          %s290 = sadd.s32 %s31, %s289
          %s291 = smul.addr %s290, 128
          %s292 = scalar_lea.hbm %s1, %s291
          %s294 = sshll.u32 %s285, 4
          %s295 = int_to_ptr.vmem [resolvable:$true] %s294
          %297 = dma.hbm_to_vmem [thread:$0]  %s292, 128, %s295, %s282
        $region44: #{tpu_custom_call.1} parent=35 // pred_fallthru
          _
      $region36: #{tpu_custom_call.1} parent=5 // pred_fallthru
        _
      %p298 = scmp.le.s32.totalorder 1, %s23
      %p299 = scmp.lt.s32.totalorder %s23, 5
      %p300 = pnand %p298, %p299
      %p301 = pneg %p300
      // Predicated region
      $region45: #{tpu_custom_call.1} parent=5 // pred_check
        _
      $region46: #{tpu_custom_call.1} parent=5 // pred_check_branch
        %303 = sbr.rel (%p300) target = $region48
      $region47: #{tpu_custom_call.1} parent=5 // pred_region
        %s304 = ssub.s32 %s23, 1
        %s305 = sand.u32 %s50, 1
        %s306 = scalar_lea.sflag [#allocation4], %s305
        %s307 = sand.u32 %s50, 1
        %s308 = smul.addr %s307, 4
        %s309 = scalar_lea.vmem [#allocation3], %s308
        // Predicated region
        $region49: #{tpu_custom_call.1} parent=47 // pred_check
          %p310 = pneg %p63
        $region50: #{tpu_custom_call.1} parent=47 // pred_check_branch
          %312 = sbr.rel (%p310) target = $region52
        $region51: #{tpu_custom_call.1} parent=47 // pred_region
          %313 = dma.done %s306, 64
        $region52: #{tpu_custom_call.1} parent=47 // pred_fallthru
          _
        %s314 = sand.u32 %s78, 1
        %s315 = scalar_lea.sflag [#allocation7], %s314
        %s316 = sand.u32 %s78, 1
        %s317 = smul.addr %s316, 8
        %s318 = scalar_lea.vmem [#allocation6], %s317
        // Predicated region
        $region53: #{tpu_custom_call.1} parent=47 // pred_check
          %p319 = pneg %p91
        $region54: #{tpu_custom_call.1} parent=47 // pred_check_branch
          %321 = sbr.rel (%p319) target = $region56
        $region55: #{tpu_custom_call.1} parent=47 // pred_region
          %322 = dma.done %s315, 128
        $region56: #{tpu_custom_call.1} parent=47 // pred_fallthru
          _
        %s323 = sand.u32 %s50, 1
        %s324 = scalar_lea.sflag [#allocation4], %s323
        %s325 = sand.u32 %s50, 1
        %s326 = smul.addr %s325, 4
        %s327 = scalar_lea.vmem [#allocation3], %s326
        %p328 = pneg %p63
        %p329 = pneg %p60
        %s330 = sand.u32 %s78, 1
        %s331 = scalar_lea.sflag [#allocation7], %s330
        %s332 = sand.u32 %s78, 1
        %s333 = smul.addr %s332, 8
        %s334 = scalar_lea.vmem [#allocation6], %s333
        %p335 = pneg %p91
        %p336 = pneg %p88
        %p337 = pneg %p112
        %p338 = pneg %p109
        %p339 = pneg %p133
        %p340 = pneg %p130
        %p341 = pneg %p154
        %p342 = pneg %p151
        %p343 = pneg %p175
        %p344 = pneg %p172
        %p345 = pneg %p196
        %p346 = pneg %p193
        %p347 = pneg %p224
        %p348 = pneg %p221
        %s349 = sand.u32 %s211, 1
        %s350 = scalar_lea.sflag [#allocation5], %s349
        %s351 = sand.u32 %s211, 1
        %s352 = smul.addr %s351, 4
        %s353 = scalar_lea.vmem [#allocation8], %s352
        %v354 = vld [vmem:[%s309] sm:$0xf]
        %v355 = vld [vmem:[%s318] sm:$0xff]
        %v356 = vld [vmem:[%s2] sm:$0xf]
        %v357 = vld [vmem:[%s3] sm:$0xf]
        %vm358 = vcmask 31744
        %v360 = vsel %vm358, %v357, 0
        %vm362 = vcmask 1043456
        %v364 = vsel %vm362, %v354, 0
        %366 = vmatprep.subr.mxu0 0.0
        %367 = vmatpush1.msra.mxu0 %v364
        %368 = vmatprep.subr.mxu0 0.0
        %369 = vmatpush1.msra.mxu0 0.0
        %370 = vmatprep.subr.mxu0 0.0
        %371 = vmatpush1.msra.mxu0 0.0
        %372 = vmatprep.subr.mxu0 0.0
        %373 = vmatpush1.msra.mxu0 0.0
        %374 = vmatprep.subr.mxu0 0.0
        %375 = vmatpush1.msra.mxu0 0.0
        %376 = vmatprep.subr.mxu0 0.0
        %377 = vmatpush1.msra.mxu0 0.0
        %378 = vmatprep.subr.mxu0 0.0
        %379 = vmatpush1.msra.mxu0 0.0
        %380 = vmatprep.subr.mxu0 0.0
        %381 = vmatpush1.msra.mxu0 0.0
        %382 = vmatprep.subr.mxu0 0.0
        %383 = vmatpush1.msra.mxu0 0.0
        %384 = vmatprep.subr.mxu0 0.0
        %385 = vmatpush1.msra.mxu0 0.0
        %386 = vmatprep.subr.mxu0 0.0
        %387 = vmatpush1.msra.mxu0 0.0
        %388 = vmatprep.subr.mxu0 0.0
        %389 = vmatpush1.msra.mxu0 0.0
        %390 = vmatprep.subr.mxu0 0.0
        %391 = vmatpush1.msra.mxu0 0.0
        %392 = vmatprep.subr.mxu0 0.0
        %393 = vmatpush1.msra.mxu0 0.0
        %394 = vmatprep.subr.mxu0 0.0
        %395 = vmatpush1.msra.mxu0 0.0
        %396 = vmatprep.subr.mxu0 0.0
        %397 = vmatpush1.msra.mxu0 0.0
        %398 = vmatprep.subr.mxu0 0.0
        %399 = vmatpush1.msra.mxu0 0.0
        %400 = vmatprep.subr.mxu0 0.0
        %401 = vmatpush1.msra.mxu0 0.0
        %402 = vmatprep.subr.mxu0 0.0
        %403 = vmatpush1.msra.mxu0 0.0
        %404 = vmatprep.subr.mxu0 0.0
        %405 = vmatpush1.msra.mxu0 0.0
        %406 = vmatprep.subr.mxu0 0.0
        %407 = vmatpush1.msra.mxu0 0.0
        %408 = vmatprep.subr.mxu0 0.0
        %409 = vmatpush1.msra.mxu0 0.0
        %410 = vmatprep.subr.mxu0 0.0
        %411 = vmatpush1.msra.mxu0 0.0
        %412 = vmatprep.subr.mxu0 0.0
        %413 = vmatpush1.msra.mxu0 0.0
        %414 = vmatprep.subr.mxu0 0.0
        %415 = vmatpush1.msra.mxu0 0.0
        %416 = vmatprep.subr.mxu0 0.0
        %417 = vmatpush1.msra.mxu0 0.0
        %418 = vmatprep.subr.mxu0 0.0
        %419 = vmatpush1.msra.mxu0 0.0
        %420 = vmatprep.subr.mxu0 0.0
        %421 = vmatpush1.msra.mxu0 0.0
        %422 = vmatprep.subr.mxu0 0.0
        %423 = vmatpush1.msra.mxu0 0.0
        %424 = vmatprep.subr.mxu0 0.0
        %425 = vmatpush1.msra.mxu0 0.0
        %426 = vmatprep.subr.mxu0 0.0
        %427 = vmatpush1.msra.mxu0 0.0
        %428 = vmatprep.subr.mxu0 0.0
        %429 = vmatpush1.msra.mxu0 0.0
        %430 = vmatprep.mubr.f32.mxu0 0.0
        %431 = vmatmul.mubr.f32.gmra.mrb[0].mxu0 %v360
        %v432 = vpop.f32.mrb[0].mxu0
        %v433 = vadd.f32 0.0, %v432
        %v434 = vpop.f32.mrb[0].mxu0
        %435 = vdwg.mxu0
        %vm436 = vcmask 64512
        %v438 = vsel %vm436, %v356, 0
        %440 = vmatprep.subr.mxu0 0.0
        %441 = vmatpush1.msra.mxu0 %v355
        %442 = vmatprep.subr.mxu0 0.0
        %443 = vmatpush1.msra.mxu0 0.0
        %444 = vmatprep.subr.mxu0 0.0
        %445 = vmatpush1.msra.mxu0 0.0
        %446 = vmatprep.subr.mxu0 0.0
        %447 = vmatpush1.msra.mxu0 0.0
        %448 = vmatprep.subr.mxu0 0.0
        %449 = vmatpush1.msra.mxu0 0.0
        %450 = vmatprep.subr.mxu0 0.0
        %451 = vmatpush1.msra.mxu0 0.0
        %452 = vmatprep.subr.mxu0 0.0
        %453 = vmatpush1.msra.mxu0 0.0
        %454 = vmatprep.subr.mxu0 0.0
        %455 = vmatpush1.msra.mxu0 0.0
        %456 = vmatprep.subr.mxu0 0.0
        %457 = vmatpush1.msra.mxu0 0.0
        %458 = vmatprep.subr.mxu0 0.0
        %459 = vmatpush1.msra.mxu0 0.0
        %460 = vmatprep.subr.mxu0 0.0
        %461 = vmatpush1.msra.mxu0 0.0
        %462 = vmatprep.subr.mxu0 0.0
        %463 = vmatpush1.msra.mxu0 0.0
        %464 = vmatprep.subr.mxu0 0.0
        %465 = vmatpush1.msra.mxu0 0.0
        %466 = vmatprep.subr.mxu0 0.0
        %467 = vmatpush1.msra.mxu0 0.0
        %468 = vmatprep.subr.mxu0 0.0
        %469 = vmatpush1.msra.mxu0 0.0
        %470 = vmatprep.subr.mxu0 0.0
        %471 = vmatpush1.msra.mxu0 0.0
        %472 = vmatprep.subr.mxu0 0.0
        %473 = vmatpush1.msra.mxu0 0.0
        %474 = vmatprep.subr.mxu0 0.0
        %475 = vmatpush1.msra.mxu0 0.0
        %476 = vmatprep.subr.mxu0 0.0
        %477 = vmatpush1.msra.mxu0 0.0
        %478 = vmatprep.subr.mxu0 0.0
        %479 = vmatpush1.msra.mxu0 0.0
        %480 = vmatprep.subr.mxu0 0.0
        %481 = vmatpush1.msra.mxu0 0.0
        %482 = vmatprep.subr.mxu0 0.0
        %483 = vmatpush1.msra.mxu0 0.0
        %484 = vmatprep.subr.mxu0 0.0
        %485 = vmatpush1.msra.mxu0 0.0
        %486 = vmatprep.subr.mxu0 0.0
        %487 = vmatpush1.msra.mxu0 0.0
        %488 = vmatprep.subr.mxu0 0.0
        %489 = vmatpush1.msra.mxu0 0.0
        %490 = vmatprep.subr.mxu0 0.0
        %491 = vmatpush1.msra.mxu0 0.0
        %492 = vmatprep.subr.mxu0 0.0
        %493 = vmatpush1.msra.mxu0 0.0
        %494 = vmatprep.subr.mxu0 0.0
        %495 = vmatpush1.msra.mxu0 0.0
        %496 = vmatprep.subr.mxu0 0.0
        %497 = vmatpush1.msra.mxu0 0.0
        %498 = vmatprep.subr.mxu0 0.0
        %499 = vmatpush1.msra.mxu0 0.0
        %500 = vmatprep.subr.mxu0 0.0
        %501 = vmatpush1.msra.mxu0 0.0
        %502 = vmatprep.subr.mxu0 0.0
        %503 = vmatpush1.msra.mxu0 0.0
        %504 = vmatprep.mubr.f32.mxu0 0.0
        %505 = vmatmul.mubr.f32.gmra.mrb[0].mxu0 %v438
        %v506 = vpop.f32.mrb[0].mxu0
        %v507 = vadd.f32 %v433, %v506
        %v508 = vpop.f32.mrb[0].mxu0
        %509 = vdwg.mxu0
        %v510 = vld [vmem:[%s4] sm:$0xf]
        %512 = vset.pattern.permute.xlu0 0
        %513 = vperm.xlu0 %512, %v510
        %v514 = vpop.permute.xlu0 %513
        %v516 = vadd.f32 %v507, %v514
        %v517 = vmul.f32 %v516, 0.2
        %v518 = vmax.f32 %v516, %v517
        %v519 = vld [vmem:[%s5] sm:$0xf]
        %521 = vset.pattern.permute.xlu0 0
        %522 = vperm.xlu0 %521, %v519
        %v523 = vpop.permute.xlu0 %522
        %v525 = vmul.f32 %v518, %v523
        %v526 = vsel %vm362, %v525, 0.0
        %v527 = vrot.slane %v526, 4
        %v528 = vadd.f32 %v526, %v527
        %v529 = vrot.slane %v528, 2
        %v530 = vadd.f32 %v528, %v529
        %v531 = vrot.slane %v530, 1
        %v532 = vadd.f32 %v530, %v531
        %s533 = sld [smem:[#allocation2]]
        %v534 = vstv %s533
        %v535 = vadd.f32 %v532, %v534
        %v536 = vmax.f32 %v535, 0.0
        %v537 = vmin.f32 %v536, 1.0
        %v538 = vmul.f32 %v354, %v537
        %539 = vst [vmem:[%s353] sm:$0xf] %v538
        %s540 = sand.u32 %s211, 1
        %s541 = scalar_lea.sflag [#allocation5], %s540
        %s542 = sand.u32 %s211, 1
        %s543 = smul.addr %s542, 4
        %s544 = scalar_lea.vmem [#allocation8], %s543
        // Predicated region
        $region57: #{tpu_custom_call.1} parent=47 // pred_check
          %p545 = pneg %p221
        $region58: #{tpu_custom_call.1} parent=47 // pred_check_branch
          %547 = sbr.rel (%p545) target = $region60
        $region59: #{tpu_custom_call.1} parent=47 // pred_region
          %s549 = ssub.s32 64, 64
          %550 = vsyncadd %s541, %s549
          %s551 = smul.addr %s32, 2
          %s552 = sadd.s32 %s33, %s551
          %s553 = smul.addr %s552, 64
          %s554 = scalar_lea.hbm %s7, %s553
          %s556 = sshll.u32 %s544, 4
          %s557 = int_to_ptr.vmem [resolvable:$true] %s556
          %559 = dma.vmem_to_hbm [thread:$0]  %s557, 64, %s554, %s541
        $region60: #{tpu_custom_call.1} parent=47 // pred_fallthru
          _
      $region48: #{tpu_custom_call.1} parent=5 // pred_fallthru
        _
      %p560 = scmp.le.s32.totalorder 2, %s23
      // Predicated region
      $region61: #{tpu_custom_call.1} parent=5 // pred_check
        %p561 = pneg %p560
      $region62: #{tpu_custom_call.1} parent=5 // pred_check_branch
        %563 = sbr.rel (%p561) target = $region64
      $region63: #{tpu_custom_call.1} parent=5 // pred_region
        %s564 = ssub.s32 %s23, 2
        // Predicated region
        $region65: #{tpu_custom_call.1} parent=63 // pred_check
          %p565 = pneg %p227
        $region66: #{tpu_custom_call.1} parent=63 // pred_check_branch
          %567 = sbr.rel (%p565) target = $region68
        $region67: #{tpu_custom_call.1} parent=63 // pred_region
          %s568 = sand.u32 %s212, 1
          %s569 = scalar_lea.sflag [#allocation5], %s568
          %s570 = sand.u32 %s212, 1
          %s571 = smul.addr %s570, 4
          %s572 = scalar_lea.vmem [#allocation8], %s571
          %573 = dma.done %s569, 64
        $region68: #{tpu_custom_call.1} parent=63 // pred_fallthru
          _
      $region64: #{tpu_custom_call.1} parent=5 // pred_fallthru
        _
    $region6: #{tpu_custom_call.1} parent=1 // loop_footer
      %s27 = sadd.s32 1, %s23
    $region7: #{tpu_custom_call.1} parent=1 // loop_footer_branch
      %22 = sbr.rel target = $region3
    $region8: #{tpu_custom_call.1} parent=1 // loop_exit
      _
    %574 = vsyncpa [#allocation4], 1
    %s575 = scalar_lea.sflag [#allocation4], 1
    %576 = vsyncpa %s575, 1
    %577 = vsyncpa [#allocation7], 1
    %s578 = scalar_lea.sflag [#allocation7], 1
    %579 = vsyncpa %s578, 1
    %580 = vsyncpa [#allocation5], 1
    %s581 = scalar_lea.sflag [#allocation5], 1
    %582 = vsyncpa %s581, 1

</llo_original>
